<compile_context>
chip_gen: v7x
topology: tpu7x:2x2x1
jax: 0.10.0
libtpu: 0.0.40
codegen_flags: <defaults>
</compile_context>

<pallas_src>
import jax
import jax.numpy as jnp
from jax import lax
from jax.experimental import pallas as pl
from jax.experimental.pallas import tpu as pltpu


def _graph_sent_kernel(x_ref, w_ref, b_ref, gw_ref, col_ref):
    # x_ref  : (Bb, n_sent, d_hid)  block of hid_sent for Bb batch elements
    # w_ref  : (d_hid, d_hid)       fc weight, PyTorch (out, in) layout, resident
    # b_ref  : (1, d_hid)           fc bias
    # gw_ref : (Bb, n_sent, n_sent) graph_W output block
    # col_ref: (Bb, 1, n_sent)      col_W output block (diag built outside)
    Bb, n_sent, d_hid = x_ref.shape

    x = x_ref[...].reshape(Bb * n_sent, d_hid).astype(jnp.float32)

    # F.normalize(x, dim=-1): x / max(||x||, 1e-12) == x * rsqrt(max(||x||^2, 1e-24))
    sq = jnp.sum(x * x, axis=-1, keepdims=True)                  # (Bb*n_sent, 1)
    xn = x * lax.rsqrt(jnp.maximum(sq, 1e-24))                   # (Bb*n_sent, d_hid)

    # Linear layer: t = xn @ W^T + b  -- ONE MXU call for all Bb*n_sent rows.
    # Contract last dim of xn with last dim of W (PyTorch (out, in)): no transpose.
    t = lax.dot_general(
        xn, w_ref[...].astype(jnp.float32),
        dimension_numbers=(((1,), (1,)), ((), ())),
        preferred_element_type=jnp.float32,
    ) + b_ref[...].astype(jnp.float32)                           # (Bb*n_sent, d_hid)

    xn3 = xn.reshape(Bb, n_sent, d_hid)
    t3 = t.reshape(Bb, n_sent, d_hid)

    # graph_W[b] = xn[b] @ t[b]^T : batched contraction on d, no explicit transpose.
    gw = jnp.einsum("bnd,bmd->bnm", xn3, t3,
                    preferred_element_type=jnp.float32)          # (Bb, n_sent, n_sent)
    gw_ref[...] = gw.astype(gw_ref.dtype)

    # col_W = sum over rows (dim=1 of the batched tensor).
    col_ref[...] = jnp.sum(gw, axis=1, keepdims=True).astype(col_ref.dtype)


def _choose_batch_block(B, n_sent, d_hid, target_rows=256, vmem_budget=8 << 20):
    """Pick how many batch elements to process per grid step.

    Aim for ~target_rows MXU rows per step, cap by a conservative VMEM budget
    (double-buffered in + out blocks), keep Bb a divisor of B, and keep at
    least 2 grid steps when B >= 2 so a v7x chip can shard across its 2 TCs.
    """
    bytes_per_b = 4 * (n_sent * d_hid + n_sent * n_sent + n_sent)
    cap_vmem = max(1, vmem_budget // (2 * bytes_per_b))
    bb = max(1, min(B, max(1, target_rows // max(n_sent, 1)), cap_vmem))
    while B % bb:
        bb -= 1
    if B // bb < 2 and B >= 2:
        bb = max(B // 2, 1)
        while bb > 1 and B % bb:
            bb -= 1
    return bb


def graph_sent(hid_sent, fc_weight, fc_bias, *, batch_block=None):
    """hid_sent: (B, n_sent, d_hid); fc_weight: (d_hid, d_hid) PyTorch-style
    (out, in); fc_bias: (d_hid,). Returns (graph_W, graph_D)."""
    B, n_sent, d_hid = hid_sent.shape
    Bb = batch_block if batch_block is not None else _choose_batch_block(B, n_sent, d_hid)
    assert B % Bb == 0, "batch block must divide batch size"
    n_blocks = B // Bb

    bias2d = fc_bias.reshape(1, d_hid)

    out_shapes = (
        jax.ShapeDtypeStruct((B, n_sent, n_sent), jnp.float32),  # graph_W
        jax.ShapeDtypeStruct((B, 1, n_sent), jnp.float32),       # col_W (lane-dense)
    )

    graph_W, col3 = pl.pallas_call(
        _graph_sent_kernel,
        out_shape=out_shapes,
        grid_spec=pltpu.PrefetchScalarGridSpec(
            num_scalar_prefetch=0,
            grid=(n_blocks,),
            in_specs=[
                pl.BlockSpec((Bb, n_sent, d_hid), lambda b: (b, 0, 0)),
                pl.BlockSpec((d_hid, d_hid), lambda b: (0, 0)),   # resident across grid
                pl.BlockSpec((1, d_hid), lambda b: (0, 0)),
            ],
            out_specs=[
                pl.BlockSpec((Bb, n_sent, n_sent), lambda b: (b, 0, 0)),
                pl.BlockSpec((Bb, 1, n_sent), lambda b: (b, 0, 0)),
            ],
        ),
        compiler_params=pltpu.CompilerParams(
            dimension_semantics=("parallel",),
        ),
    )(hid_sent, fc_weight, bias2d)

    # graph_D = batch of diag(col_W). Built outside the kernel as a trivial
    # broadcast * eye so the kernel never writes the >99%-zero dense matrix
    # (halves kernel output bandwidth, the binding resource).
    col_W = col3[:, 0, :]                                        # (B, n_sent)
    graph_D = col_W[:, :, None] * jnp.eye(n_sent, dtype=graph_W.dtype)
    return graph_W, graph_D


def _reference(hid_sent, fc_weight, fc_bias):
    # Pure-JAX reference mirroring the PyTorch forward.
    nrm = jnp.maximum(jnp.linalg.norm(hid_sent, axis=2, keepdims=True), 1e-12)
    xn = hid_sent / nrm
    t = jnp.einsum("bnd,od->bno", xn, fc_weight) + fc_bias
    gw = jnp.einsum("bnd,bmd->bnm", xn, t)
    col = jnp.sum(gw, axis=1)
    gd = jax.vmap(jnp.diag)(col)
    return gw, gd


if __name__ == "__main__":
    key = jax.random.PRNGKey(0)
    B, n_sent, d_hid = 2, 8, 32

    k1, k2, k3 = jax.random.split(key, 3)
    hid_sent = jax.random.normal(k1, (B, n_sent, d_hid), dtype=jnp.float32)
    # Deterministic "Linear" parameters (PyTorch shape convention: (out, in)).
    fc_weight = jax.random.normal(k2, (d_hid, d_hid), dtype=jnp.float32) * 0.1
    fc_bias = jax.random.normal(k3, (d_hid,), dtype=jnp.float32) * 0.1

    graph_W, graph_D = graph_sent(hid_sent, fc_weight, fc_bias)
    jax.block_until_ready((graph_W, graph_D))

    ref_W, ref_D = _reference(hid_sent, fc_weight, fc_bias)
    assert jnp.allclose(graph_W, ref_W, atol=1e-4, rtol=1e-4)
    assert jnp.allclose(graph_D, ref_D, atol=1e-4, rtol=1e-4)

    print("KERNEL_OK")
</pallas_src>

<mosaic_0001>
module attributes {stable_mosaic.version = 11 : i64} {
  func.func @_graph_sent_kernel(%arg0: i32, %arg1: memref<1x8x32xf32, #tpu.memory_space<vmem>>, %arg2: memref<32x32xf32, #tpu.memory_space<vmem>>, %arg3: memref<1x32xf32, #tpu.memory_space<vmem>>, %arg4: memref<1x8x8xf32, #tpu.memory_space<vmem>>, %arg5: memref<1x1x8xf32, #tpu.memory_space<vmem>>) attributes {dimension_semantics = [#tpu.dimension_semantics<parallel>], iteration_bounds = array<i64: 2>, scalar_prefetch = 0 : i64, scratch_operands = 0 : i64, tpu.core_type = #tpu.core_type<tc>, window_params = [{transform_indices = @transform_0, window_bounds = array<i64: 1, 8, 32>}, {pipeline_mode = #tpu.pipeline_mode<synchronous>, transform_indices = @transform_1, window_bounds = array<i64: 32, 32>}, {pipeline_mode = #tpu.pipeline_mode<synchronous>, transform_indices = @transform_2, window_bounds = array<i64: 1, 32>}, {transform_indices = @transform_3, window_bounds = array<i64: 1, 8, 8>}, {transform_indices = @transform_4, window_bounds = array<i64: 1, 1, 8>}]} {
    %c0 = arith.constant 0 : index
    %c0_0 = arith.constant 0 : index
    %c0_1 = arith.constant 0 : index
    %0 = vector.load %arg1[%c0, %c0_0, %c0_1] : memref<1x8x32xf32, #tpu.memory_space<vmem>>, vector<1x8x32xf32>
    %1 = vector.shape_cast %0 : vector<1x8x32xf32> to vector<8x32xf32>
    %2 = arith.mulf %1, %1 : vector<8x32xf32>
    %cst = arith.constant dense<0.000000e+00> : vector<8xf32>
    %3 = vector.multi_reduction <add>, %2, %cst [1] : vector<8x32xf32> to vector<8xf32>
    %4 = vector.shape_cast %3 : vector<8xf32> to vector<8x1xf32>
    %cst_2 = arith.constant 1.000000e-24 : f32
    %5 = vector.broadcast %cst_2 : f32 to vector<8x1xf32>
    %6 = arith.maximumf %4, %5 : vector<8x1xf32>
    %7 = math.rsqrt %6 : vector<8x1xf32>
    %8 = vector.broadcast %7 : vector<8x1xf32> to vector<8x32xf32>
    %9 = arith.mulf %1, %8 : vector<8x32xf32>
    %c0_3 = arith.constant 0 : index
    %c0_4 = arith.constant 0 : index
    %10 = vector.load %arg2[%c0_3, %c0_4] : memref<32x32xf32, #tpu.memory_space<vmem>>, vector<32x32xf32>
    %cst_5 = arith.constant dense<0.000000e+00> : vector<8x32xf32>
    %11 = tpu.matmul %9, %10, %cst_5 {dimension_numbers = #tpu.dot_dimension_numbers<[1], [1], [0], [0], [0, 0, 1, 0], [], []>} : vector<8x32xf32>, vector<32x32xf32>, vector<8x32xf32> -> vector<8x32xf32>
    %c0_6 = arith.constant 0 : index
    %c0_7 = arith.constant 0 : index
    %12 = vector.load %arg3[%c0_6, %c0_7] : memref<1x32xf32, #tpu.memory_space<vmem>>, vector<1x32xf32>
    %13 = vector.broadcast %12 : vector<1x32xf32> to vector<8x32xf32>
    %14 = arith.addf %11, %13 : vector<8x32xf32>
    %15 = vector.shape_cast %9 : vector<8x32xf32> to vector<1x8x32xf32>
    %16 = vector.shape_cast %14 : vector<8x32xf32> to vector<1x8x32xf32>
    "tpu.trace_start"() <{level = 10 : i32, message = "bnd,bmd->bnm"}> : () -> ()
    %cst_8 = arith.constant dense<0.000000e+00> : vector<1x8x8xf32>
    %17 = tpu.matmul %15, %16, %cst_8 {dimension_numbers = #tpu.dot_dimension_numbers<[2], [2], [1], [1], [0, 0, 0, 1, 1, 1], [0], [0]>} : vector<1x8x32xf32>, vector<1x8x32xf32>, vector<1x8x8xf32> -> vector<1x8x8xf32>
    "tpu.trace_stop"() : () -> ()
    %c0_9 = arith.constant 0 : index
    %c0_10 = arith.constant 0 : index
    %c0_11 = arith.constant 0 : index
    %18 = vector.load %arg4[%c0_9, %c0_10, %c0_11] : memref<1x8x8xf32, #tpu.memory_space<vmem>>, vector<1x8x8xf32>
    tpu.vector_store %arg4[%c0_9, %c0_10, %c0_11], %17 {strides = array<i32>} : memref<1x8x8xf32, #tpu.memory_space<vmem>>, vector<1x8x8xf32>,
    %cst_12 = arith.constant dense<0.000000e+00> : vector<1x8xf32>
    %19 = vector.multi_reduction <add>, %17, %cst_12 [1] : vector<1x8x8xf32> to vector<1x8xf32>
    %20 = vector.shape_cast %19 : vector<1x8xf32> to vector<1x1x8xf32>
    %c0_13 = arith.constant 0 : index
    %c0_14 = arith.constant 0 : index
    %c0_15 = arith.constant 0 : index
    %21 = vector.load %arg5[%c0_13, %c0_14, %c0_15] : memref<1x1x8xf32, #tpu.memory_space<vmem>>, vector<1x1x8xf32>
    tpu.vector_store %arg5[%c0_13, %c0_14, %c0_15], %20 {strides = array<i32>} : memref<1x1x8xf32, #tpu.memory_space<vmem>>, vector<1x1x8xf32>,
    return
  }
  func.func @transform_0(%arg0: i32) -> (i32, i32, i32) {
    %c0_i32 = arith.constant 0 : i32
    %c0_i32_0 = arith.constant 0 : i32
    %c0_i32_1 = arith.constant 0 : i32
    return %arg0, %c0_i32, %c0_i32_0 : i32, i32, i32
  }
  func.func @transform_1(%arg0: i32) -> (i32, i32) {
    %c0_i32 = arith.constant 0 : i32
    %c0_i32_0 = arith.constant 0 : i32
    %c0_i32_1 = arith.constant 0 : i32
    return %c0_i32, %c0_i32_0 : i32, i32
  }
  func.func @transform_2(%arg0: i32) -> (i32, i32) {
    %c0_i32 = arith.constant 0 : i32
    %c0_i32_0 = arith.constant 0 : i32
    %c0_i32_1 = arith.constant 0 : i32
    return %c0_i32, %c0_i32_0 : i32, i32
  }
  func.func @transform_3(%arg0: i32) -> (i32, i32, i32) {
    %c0_i32 = arith.constant 0 : i32
    %c0_i32_0 = arith.constant 0 : i32
    %c0_i32_1 = arith.constant 0 : i32
    return %arg0, %c0_i32, %c0_i32_0 : i32, i32, i32
  }
  func.func @transform_4(%arg0: i32) -> (i32, i32, i32) {
    %c0_i32 = arith.constant 0 : i32
    %c0_i32_0 = arith.constant 0 : i32
    %c0_i32_1 = arith.constant 0 : i32
    return %arg0, %c0_i32, %c0_i32_0 : i32, i32, i32
  }
}

</mosaic_0001>

<llo_original>
// kernel: tpu_custom_call.1
$region0: #{tpu_custom_call.1}
  #allocation0 [shape = 'u32[]', space=smem, size = 0x4, offset = 0x4, fixed_abs, tag = 'smem constant byte address 0x4 - core index']
  #allocation1 [shape = 'u32[144,128]{1,0:T(1,128)}', space=vmem, size = 0x12000, scoped, tag = 'internal scratch']
  %s0 = inlined_call_operand.hbm [shape: f32[2,8,32], index: 0, kind: input, shape index: {}]
  %s1 = inlined_call_operand.hbm [shape: f32[32,32], index: 1, kind: input, shape index: {}]
  %s2 = inlined_call_operand.vmem [shape: f32[1,32], index: 2, kind: input, shape index: {}]
  %s3 = inlined_call_operand.hbm [shape: f32[2,8,8], index: 3, kind: output, shape index: {0}]
  %s4 = inlined_call_operand.hbm [shape: f32[2,1,8], index: 4, kind: output, shape index: {1}]
  %5 = xla_tuple %s3, %s4
  %s6 = sld [smem:[#allocation0]]
  $region61: #{tpu_custom_call.1} parent=0
    _
  %s8 = ssub.s32 1, %s6
  %s9 = scalar_select 0, %s8, %s6
  $region1: #{tpu_custom_call.1} parent=0
    #allocation2 [shape = 'u8[8192]{0}', space=vmem, size = 0x2000, scoped, tag = 'input window, operand 0']
    #allocation3 [shape = 's32[2]{0}', space=sflag, size = 0x8, scoped, tag = 'scoped memory for tpu_custom_call.1']
    #allocation4 [shape = 's32[2]{0}', space=sflag, size = 0x8, scoped, tag = 'scoped memory for tpu_custom_call.1']
    #allocation5 [shape = 'u8[16384]{0}', space=vmem, size = 0x4000, scoped, tag = 'input window, operand 1, single buffered']
    #allocation6 [shape = 's32[1]{0}', space=sflag, size = 0x4, scoped, tag = 'scoped memory for tpu_custom_call.1']
    #allocation7 [shape = 'u8[8192]{0}', space=vmem, size = 0x2000, scoped, tag = 'output window, operand 0']
    #allocation8 [shape = 'u8[1024]{0}', space=vmem, size = 0x400, scoped, tag = 'output window, operand 1']
    #allocation9 [shape = 's32[2]{0}', space=sflag, size = 0x8, scoped, tag = 'scoped memory for tpu_custom_call.1']
    %10 = vsyncpa [#allocation3], 0
    %s11 = scalar_lea.sflag [#allocation3], 1
    %12 = vsyncpa %s11, 0
    %13 = vsyncpa [#allocation6], 0
    %14 = vsyncpa [#allocation4], 0
    %s15 = scalar_lea.sflag [#allocation4], 1
    %16 = vsyncpa %s15, 0
    %17 = vsyncpa [#allocation9], 0
    %s18 = scalar_lea.sflag [#allocation9], 1
    %19 = vsyncpa %s18, 0
    loop: start=0, step=1, limit=4
    $region2: #{tpu_custom_call.1} parent=1 // loop_pre_header
      _
    $region3: #{tpu_custom_call.1} parent=1 // loop_header
      %s21 = sphi 0, %s25
      %p22 = scmp.ge.s32.totalorder %s21, 4
      %s31 = sphi 0, %s33
      %s34 = sphi 0, %s31
      %s35 = sphi 0, %s34
      %s51 = sphi 0, %s35
      %s55 = sphi 0, %s55
      %s57 = sphi 0, %s55
      %s58 = sphi 0, %s57
      %s72 = sphi 0, %s58
      %s76 = sphi 0, %s76
      %s78 = sphi 0, %s76
      %s79 = sphi 0, %s78
      %s93 = sphi 0, %s79
      %s99 = sphi 0, %s101
      %s102 = sphi 0, %s99
      %s103 = sphi 0, %s102
      %s119 = sphi 0, %s103
      %s125 = sphi 0, %s127
      %s128 = sphi 0, %s125
      %s129 = sphi 0, %s128
      %s145 = sphi 0, %s129
    $region4: #{tpu_custom_call.1} parent=1 // loop_header_branch
      %24 = sbr.rel (%p22) target = $region8
    $region5: #{tpu_custom_call.1} parent=1 // loop_body
      %s26 = ssub.s32 %s21, 1
      %s27 = ssub.s32 %s21, 2
      %s28 = sadd.s32 %s21, 1
      %s29 = ssub.s32 %s21, %s28
      %p30 = scmp.eq.s32.totalorder %s29, 0
      %s32 = sadd.s32 %s31, 1
      %s33 = scalar_select %p30, %s31, %s32
      %p36 = pneg %p30
      %p37 = scmp.eq.s32.totalorder %s21, 1
      %p38 = por %p36, %p37
      %p39 = scmp.ne.s32.totalorder %s31, %s34
      %p40 = scmp.eq.s32.totalorder %s21, 0
      %p41 = por %p39, %p40
      %p42 = scmp.ne.s32.totalorder %s31, %s34
      %p43 = scmp.eq.s32.totalorder %s26, 1
      %p44 = por %p42, %p43
      %p45 = scmp.ne.s32.totalorder %s34, %s35
      %p46 = scmp.eq.s32.totalorder %s26, 0
      %p47 = por %p45, %p46
      %p48 = scmp.ne.s32.totalorder %s34, %s35
      %p49 = scmp.eq.s32.totalorder %s27, 1
      %p50 = por %p48, %p49
      %p52 = scmp.ne.s32.totalorder %s35, %s51
      %p53 = scmp.eq.s32.totalorder %s27, 0
      %p54 = por %p52, %p53
      %s56 = sadd.s32 %s55, 1
      %p59 = scmp.eq.s32.totalorder %s21, 1
      %p60 = scmp.ne.s32.totalorder %s55, %s57
      %p61 = scmp.eq.s32.totalorder %s21, 0
      %p62 = por %p60, %p61
      %p63 = scmp.ne.s32.totalorder %s55, %s57
      %p64 = scmp.eq.s32.totalorder %s26, 1
      %p65 = por %p63, %p64
      %p66 = scmp.ne.s32.totalorder %s57, %s58
      %p67 = scmp.eq.s32.totalorder %s26, 0
      %p68 = por %p66, %p67
      %p69 = scmp.ne.s32.totalorder %s57, %s58
      %p70 = scmp.eq.s32.totalorder %s27, 1
      %p71 = por %p69, %p70
      %p73 = scmp.ne.s32.totalorder %s58, %s72
      %p74 = scmp.eq.s32.totalorder %s27, 0
      %p75 = por %p73, %p74
      %s77 = sadd.s32 %s76, 1
      %p80 = scmp.eq.s32.totalorder %s21, 1
      %p81 = scmp.ne.s32.totalorder %s76, %s78
      %p82 = scmp.eq.s32.totalorder %s21, 0
      %p83 = por %p81, %p82
      %p84 = scmp.ne.s32.totalorder %s76, %s78
      %p85 = scmp.eq.s32.totalorder %s26, 1
      %p86 = por %p84, %p85
      %p87 = scmp.ne.s32.totalorder %s78, %s79
      %p88 = scmp.eq.s32.totalorder %s26, 0
      %p89 = por %p87, %p88
      %p90 = scmp.ne.s32.totalorder %s78, %s79
      %p91 = scmp.eq.s32.totalorder %s27, 1
      %p92 = por %p90, %p91
      %p94 = scmp.ne.s32.totalorder %s79, %s93
      %p95 = scmp.eq.s32.totalorder %s27, 0
      %p96 = por %p94, %p95
      %s97 = ssub.s32 %s21, %s28
      %p98 = scmp.eq.s32.totalorder %s97, 0
      %s100 = sadd.s32 %s99, 1
      %s101 = scalar_select %p98, %s99, %s100
      %p104 = pneg %p98
      %p105 = scmp.eq.s32.totalorder %s21, 1
      %p106 = por %p104, %p105
      %p107 = scmp.ne.s32.totalorder %s99, %s102
      %p108 = scmp.eq.s32.totalorder %s21, 0
      %p109 = por %p107, %p108
      %p110 = scmp.ne.s32.totalorder %s99, %s102
      %p111 = scmp.eq.s32.totalorder %s26, 1
      %p112 = por %p110, %p111
      %p113 = scmp.ne.s32.totalorder %s102, %s103
      %p114 = scmp.eq.s32.totalorder %s26, 0
      %p115 = por %p113, %p114
      %p116 = scmp.ne.s32.totalorder %s102, %s103
      %p117 = scmp.eq.s32.totalorder %s27, 1
      %p118 = por %p116, %p117
      %p120 = scmp.ne.s32.totalorder %s103, %s119
      %p121 = scmp.eq.s32.totalorder %s27, 0
      %p122 = por %p120, %p121
      %s123 = ssub.s32 %s21, %s28
      %p124 = scmp.eq.s32.totalorder %s123, 0
      %s126 = sadd.s32 %s125, 1
      %s127 = scalar_select %p124, %s125, %s126
      %p130 = pneg %p124
      %p131 = scmp.eq.s32.totalorder %s21, 1
      %p132 = por %p130, %p131
      %p133 = scmp.ne.s32.totalorder %s125, %s128
      %p134 = scmp.eq.s32.totalorder %s21, 0
      %p135 = por %p133, %p134
      %p136 = scmp.ne.s32.totalorder %s125, %s128
      %p137 = scmp.eq.s32.totalorder %s26, 1
      %p138 = por %p136, %p137
      %p139 = scmp.ne.s32.totalorder %s128, %s129
      %p140 = scmp.eq.s32.totalorder %s26, 0
      %p141 = por %p139, %p140
      %p142 = scmp.ne.s32.totalorder %s128, %s129
      %p143 = scmp.eq.s32.totalorder %s27, 1
      %p144 = por %p142, %p143
      %p146 = scmp.ne.s32.totalorder %s129, %s145
      %p147 = scmp.eq.s32.totalorder %s27, 0
      %p148 = por %p146, %p147
      %p149 = scmp.le.s32.totalorder 1, %s21
      %p150 = scmp.lt.s32.totalorder %s21, 3
      %p151 = pnand %p149, %p150
      %p152 = pneg %p151
      // Predicated region
      $region9: #{tpu_custom_call.1} parent=5 // pred_check
        _
      $region10: #{tpu_custom_call.1} parent=5 // pred_check_branch
        %154 = sbr.rel (%p151) target = $region12
      $region11: #{tpu_custom_call.1} parent=5 // pred_region
        %s155 = ssub.s32 %s21, 1
        // Predicated region
        $region13: #{tpu_custom_call.1} parent=11 // pred_check
          %p156 = pneg %p68
        $region14: #{tpu_custom_call.1} parent=11 // pred_check_branch
          %158 = sbr.rel (%p156) target = $region16
        $region15: #{tpu_custom_call.1} parent=11 // pred_region
          %s160 = ssub.s32 512, 512
          %161 = vsyncadd [#allocation6], %s160
          %s162 = sshll.u32 [#allocation5], 4
          %s163 = int_to_ptr.vmem [resolvable:$true] %s162
          %168 = dma.hbm_to_vmem [thread:$0]  %s1, 512, %s163, [#allocation6], 128, 128, 8
        $region16: #{tpu_custom_call.1} parent=11 // pred_fallthru
          _
        // Predicated region
        $region17: #{tpu_custom_call.1} parent=11 // pred_check
          %p169 = pneg %p89
        $region18: #{tpu_custom_call.1} parent=11 // pred_check_branch
          %171 = sbr.rel (%p169) target = $region20
        $region19: #{tpu_custom_call.1} parent=11 // pred_region
          _
        $region20: #{tpu_custom_call.1} parent=11 // pred_fallthru
          _
      $region12: #{tpu_custom_call.1} parent=5 // pred_fallthru
        _
      %p172 = scmp.lt.s32.totalorder %s21, 2
      // Predicated region
      $region21: #{tpu_custom_call.1} parent=5 // pred_check
        %p173 = pneg %p172
      $region22: #{tpu_custom_call.1} parent=5 // pred_check_branch
        %175 = sbr.rel (%p173) target = $region24
      $region23: #{tpu_custom_call.1} parent=5 // pred_region
        // Predicated region
        $region25: #{tpu_custom_call.1} parent=23 // pred_check
          %p176 = pneg %p41
        $region26: #{tpu_custom_call.1} parent=23 // pred_check_branch
          %178 = sbr.rel (%p176) target = $region28
        $region27: #{tpu_custom_call.1} parent=23 // pred_region
          %s179 = sand.u32 %s31, 1
          %s180 = scalar_lea.sflag [#allocation3], %s179
          %s181 = sand.u32 %s31, 1
          %s182 = smul.addr %s181, 8
          %s183 = scalar_lea.vmem [#allocation2], %s182
          %s185 = ssub.s32 128, 128
          %186 = vsyncadd %s180, %s185
          %s187 = smul.addr %s21, 128
          %s188 = scalar_lea.hbm %s0, %s187
          %s190 = sshll.u32 %s183, 4
          %s191 = int_to_ptr.vmem [resolvable:$true] %s190
          %193 = dma.hbm_to_vmem [thread:$0]  %s188, 128, %s191, %s180
        $region28: #{tpu_custom_call.1} parent=23 // pred_fallthru
          _
      $region24: #{tpu_custom_call.1} parent=5 // pred_fallthru
        _
      %p194 = scmp.le.s32.totalorder 1, %s21
      %p195 = scmp.lt.s32.totalorder %s21, 3
      %p196 = pnand %p194, %p195
      %p197 = pneg %p196
      // Predicated region
      $region29: #{tpu_custom_call.1} parent=5 // pred_check
        _
      $region30: #{tpu_custom_call.1} parent=5 // pred_check_branch
        %199 = sbr.rel (%p196) target = $region32
      $region31: #{tpu_custom_call.1} parent=5 // pred_region
        %s200 = ssub.s32 %s21, 1
        %s201 = sand.u32 %s34, 1
        %s202 = scalar_lea.sflag [#allocation3], %s201
        %s203 = sand.u32 %s34, 1
        %s204 = smul.addr %s203, 8
        %s205 = scalar_lea.vmem [#allocation2], %s204
        // Predicated region
        $region33: #{tpu_custom_call.1} parent=31 // pred_check
          %p206 = pneg %p47
        $region34: #{tpu_custom_call.1} parent=31 // pred_check_branch
          %208 = sbr.rel (%p206) target = $region36
        $region35: #{tpu_custom_call.1} parent=31 // pred_region
          %209 = dma.done %s202, 128
        $region36: #{tpu_custom_call.1} parent=31 // pred_fallthru
          _
        // Predicated region
        $region37: #{tpu_custom_call.1} parent=31 // pred_check
          %p210 = pneg %p68
        $region38: #{tpu_custom_call.1} parent=31 // pred_check_branch
          %212 = sbr.rel (%p210) target = $region40
        $region39: #{tpu_custom_call.1} parent=31 // pred_region
          %213 = dma.done [#allocation6], 512
        $region40: #{tpu_custom_call.1} parent=31 // pred_fallthru
          _
        %s214 = sand.u32 %s34, 1
        %s215 = scalar_lea.sflag [#allocation3], %s214
        %s216 = sand.u32 %s34, 1
        %s217 = smul.addr %s216, 8
        %s218 = scalar_lea.vmem [#allocation2], %s217
        %p219 = pneg %p47
        %p220 = pneg %p44
        %p221 = pneg %p68
        %p222 = pneg %p65
        %p223 = pneg %p89
        %p224 = pneg %p86
        %p225 = pneg %p115
        %p226 = pneg %p112
        %s227 = sand.u32 %s102, 1
        %s228 = scalar_lea.sflag [#allocation4], %s227
        %s229 = sand.u32 %s102, 1
        %s230 = smul.addr %s229, 8
        %s231 = scalar_lea.vmem [#allocation7], %s230
        %p232 = pneg %p141
        %p233 = pneg %p138
        %s234 = sand.u32 %s128, 1
        %s235 = scalar_lea.sflag [#allocation9], %s234
        %s236 = sand.u32 %s128, 1
        %s237 = scalar_lea.vmem [#allocation8], %s236
        %v238 = vld [vmem:[%s205] sm:$0xff]
        %v239 = vmul.f32 %v238, %v238
        %vm240 = vcmask 261120
        %v241 = vsel %vm240, %v239, 0.0
        %242 = vadd.xlane.f32.xlu0 %v241
        %v243 = vpop.xlane.xlu0 %242
        %v244 = vmax.f32 %v243, 1e-24
        %v245 = vrsqrt.pop %v244
        %v246 = vmul.f32 %v238, %v245
        %v247 = vld [vmem:[#allocation5] sm:$0xff]
        %v248 = vld [vmem:[#allocation5 + $0x8] sm:$0xff]
        %v249 = vld [vmem:[#allocation5 + $0x10] sm:$0xff]
        %v250 = vld [vmem:[#allocation5 + $0x18] sm:$0xff]
        %v251 = vld [vmem:[%s2] sm:$0x1]
        %v253 = vlaneseq
        %v254 = vshrl.u32 %v253, 7
        %v255 = vsub.s32 0, %v254
        %v256 = vrot.slane %v251, %v255
        %v259 = vsel %vm240, %v246, 0
        %v262 = vsel %vm240, %v247, 0
        %v265 = vsel %vm240, %v248, 0
        %v268 = vsel %vm240, %v249, 0
        %v271 = vsel %vm240, %v250, 0
        %273 = vmatprep.subr.mxu0 0.0
        %274 = vmatpush1.xpose.msra.mxu0 %v262
        %275 = vmatprep.subr.mxu0 0.0
        %276 = vmatpush1.xpose.msra.mxu0 %v265
        %277 = vmatprep.subr.mxu0 0.0
        %278 = vmatpush1.xpose.msra.mxu0 %v268
        %279 = vmatprep.subr.mxu0 0.0
        %280 = vmatpush1.xpose.msra.mxu0 %v271
        %281 = vmatprep.subr.mxu0 0.0
        %282 = vmatpush1.xpose.msra.mxu0 0.0
        %283 = vmatprep.subr.mxu0 0.0
        %284 = vmatpush1.xpose.msra.mxu0 0.0
        %285 = vmatprep.subr.mxu0 0.0
        %286 = vmatpush1.xpose.msra.mxu0 0.0
        %287 = vmatprep.subr.mxu0 0.0
        %288 = vmatpush1.xpose.msra.mxu0 0.0
        %289 = vmatprep.subr.mxu0 0.0
        %290 = vmatpush1.xpose.msra.mxu0 0.0
        %291 = vmatprep.subr.mxu0 0.0
        %292 = vmatpush1.xpose.msra.mxu0 0.0
        %293 = vmatprep.subr.mxu0 0.0
        %294 = vmatpush1.xpose.msra.mxu0 0.0
        %295 = vmatprep.subr.mxu0 0.0
        %296 = vmatpush1.xpose.msra.mxu0 0.0
        %297 = vmatprep.subr.mxu0 0.0
        %298 = vmatpush1.xpose.msra.mxu0 0.0
        %299 = vmatprep.subr.mxu0 0.0
        %300 = vmatpush1.xpose.msra.mxu0 0.0
        %301 = vmatprep.subr.mxu0 0.0
        %302 = vmatpush1.xpose.msra.mxu0 0.0
        %303 = vmatprep.subr.mxu0 0.0
        %304 = vmatpush1.xpose.msra.mxu0 0.0
        %305 = vmatprep.subr.mxu0 0.0
        %306 = vmatpush1.xpose.msra.mxu0 0.0
        %307 = vmatprep.subr.mxu0 0.0
        %308 = vmatpush1.xpose.msra.mxu0 0.0
        %309 = vmatprep.subr.mxu0 0.0
        %310 = vmatpush1.xpose.msra.mxu0 0.0
        %311 = vmatprep.subr.mxu0 0.0
        %312 = vmatpush1.xpose.msra.mxu0 0.0
        %313 = vmatprep.subr.mxu0 0.0
        %314 = vmatpush1.xpose.msra.mxu0 0.0
        %315 = vmatprep.subr.mxu0 0.0
        %316 = vmatpush1.xpose.msra.mxu0 0.0
        %317 = vmatprep.subr.mxu0 0.0
        %318 = vmatpush1.xpose.msra.mxu0 0.0
        %319 = vmatprep.subr.mxu0 0.0
        %320 = vmatpush1.xpose.msra.mxu0 0.0
        %321 = vmatprep.subr.mxu0 0.0
        %322 = vmatpush1.xpose.msra.mxu0 0.0
        %323 = vmatprep.subr.mxu0 0.0
        %324 = vmatpush1.xpose.msra.mxu0 0.0
        %325 = vmatprep.subr.mxu0 0.0
        %326 = vmatpush1.xpose.msra.mxu0 0.0
        %327 = vmatprep.subr.mxu0 0.0
        %328 = vmatpush1.xpose.msra.mxu0 0.0
        %329 = vmatprep.subr.mxu0 0.0
        %330 = vmatpush1.xpose.msra.mxu0 0.0
        %331 = vmatprep.subr.mxu0 0.0
        %332 = vmatpush1.xpose.msra.mxu0 0.0
        %333 = vmatprep.subr.mxu0 0.0
        %334 = vmatpush1.xpose.msra.mxu0 0.0
        %335 = vmatprep.subr.mxu0 0.0
        %336 = vmatpush1.xpose.msra.mxu0 0.0
        %337 = vmatprep.mubr.f32.mxu0 0.0
        %338 = vmatmul.mubr.f32.gmra.mrb[0].mxu0 %v259
        %v339 = vpop.f32.mrb[0].mxu0
        %v340 = vadd.f32 %v256, %v339
        %v341 = vpop.f32.mrb[0].mxu0
        %342 = vdwg.mxu0
        %v344 = vsel %vm240, %v340, 0
        %346 = vmatprep.subr.mxu0 0.0
        %347 = vmatpush1.xpose.msra.mxu0 %v344
        %348 = vmatprep.subr.mxu0 0.0
        %349 = vmatpush1.xpose.msra.mxu0 0.0
        %350 = vmatprep.subr.mxu0 0.0
        %351 = vmatpush1.xpose.msra.mxu0 0.0
        %352 = vmatprep.subr.mxu0 0.0
        %353 = vmatpush1.xpose.msra.mxu0 0.0
        %354 = vmatprep.subr.mxu0 0.0
        %355 = vmatpush1.xpose.msra.mxu0 0.0
        %356 = vmatprep.subr.mxu0 0.0
        %357 = vmatpush1.xpose.msra.mxu0 0.0
        %358 = vmatprep.subr.mxu0 0.0
        %359 = vmatpush1.xpose.msra.mxu0 0.0
        %360 = vmatprep.subr.mxu0 0.0
        %361 = vmatpush1.xpose.msra.mxu0 0.0
        %362 = vmatprep.subr.mxu0 0.0
        %363 = vmatpush1.xpose.msra.mxu0 0.0
        %364 = vmatprep.subr.mxu0 0.0
        %365 = vmatpush1.xpose.msra.mxu0 0.0
        %366 = vmatprep.subr.mxu0 0.0
        %367 = vmatpush1.xpose.msra.mxu0 0.0
        %368 = vmatprep.subr.mxu0 0.0
        %369 = vmatpush1.xpose.msra.mxu0 0.0
        %370 = vmatprep.subr.mxu0 0.0
        %371 = vmatpush1.xpose.msra.mxu0 0.0
        %372 = vmatprep.subr.mxu0 0.0
        %373 = vmatpush1.xpose.msra.mxu0 0.0
        %374 = vmatprep.subr.mxu0 0.0
        %375 = vmatpush1.xpose.msra.mxu0 0.0
        %376 = vmatprep.subr.mxu0 0.0
        %377 = vmatpush1.xpose.msra.mxu0 0.0
        %378 = vmatprep.subr.mxu0 0.0
        %379 = vmatpush1.xpose.msra.mxu0 0.0
        %380 = vmatprep.subr.mxu0 0.0
        %381 = vmatpush1.xpose.msra.mxu0 0.0
        %382 = vmatprep.subr.mxu0 0.0
        %383 = vmatpush1.xpose.msra.mxu0 0.0
        %384 = vmatprep.subr.mxu0 0.0
        %385 = vmatpush1.xpose.msra.mxu0 0.0
        %386 = vmatprep.subr.mxu0 0.0
        %387 = vmatpush1.xpose.msra.mxu0 0.0
        %388 = vmatprep.subr.mxu0 0.0
        %389 = vmatpush1.xpose.msra.mxu0 0.0
        %390 = vmatprep.subr.mxu0 0.0
        %391 = vmatpush1.xpose.msra.mxu0 0.0
        %392 = vmatprep.subr.mxu0 0.0
        %393 = vmatpush1.xpose.msra.mxu0 0.0
        %394 = vmatprep.subr.mxu0 0.0
        %395 = vmatpush1.xpose.msra.mxu0 0.0
        %396 = vmatprep.subr.mxu0 0.0
        %397 = vmatpush1.xpose.msra.mxu0 0.0
        %398 = vmatprep.subr.mxu0 0.0
        %399 = vmatpush1.xpose.msra.mxu0 0.0
        %400 = vmatprep.subr.mxu0 0.0
        %401 = vmatpush1.xpose.msra.mxu0 0.0
        %402 = vmatprep.subr.mxu0 0.0
        %403 = vmatpush1.xpose.msra.mxu0 0.0
        %404 = vmatprep.subr.mxu0 0.0
        %405 = vmatpush1.xpose.msra.mxu0 0.0
        %406 = vmatprep.subr.mxu0 0.0
        %407 = vmatpush1.xpose.msra.mxu0 0.0
        %408 = vmatprep.subr.mxu0 0.0
        %409 = vmatpush1.xpose.msra.mxu0 0.0
        %410 = vmatprep.mubr.f32.mxu0 0.0
        %411 = vmatmul.mubr.f32.gmra.mrb[0].mxu0 %v259
        %v412 = vpop.f32.mrb[0].mxu0
        %v413 = vadd.f32 0.0, %v412
        %v414 = vpop.f32.mrb[0].mxu0
        %415 = vdwg.mxu0
        %vm416 = vcmask 64512
        %417 = vst.msk [vmem:[%s231] sm:$0xff] %vm416, %v413
        %v418 = vsel %vm416, %v413, 0.0
        %v419 = vrot.slane %v418, 4
        %v420 = vadd.f32 %v418, %v419
        %v421 = vrot.slane %v420, 2
        %v422 = vadd.f32 %v420, %v421
        %v423 = vrot.slane %v422, 1
        %v424 = vadd.f32 %v422, %v423
        %vm425 = vcmask 57344
        %426 = vst.msk [vmem:[%s237] sm:$0x1] %vm425, %v424
        %s427 = sand.u32 %s102, 1
        %s428 = scalar_lea.sflag [#allocation4], %s427
        %s429 = sand.u32 %s102, 1
        %s430 = smul.addr %s429, 8
        %s431 = scalar_lea.vmem [#allocation7], %s430
        %s432 = sand.u32 %s128, 1
        %s433 = scalar_lea.sflag [#allocation9], %s432
        %s434 = sand.u32 %s128, 1
        %s435 = scalar_lea.vmem [#allocation8], %s434
        // Predicated region
        $region41: #{tpu_custom_call.1} parent=31 // pred_check
          %p436 = pneg %p112
        $region42: #{tpu_custom_call.1} parent=31 // pred_check_branch
          %438 = sbr.rel (%p436) target = $region44
        $region43: #{tpu_custom_call.1} parent=31 // pred_region
          %s440 = ssub.s32 128, 128
          %441 = vsyncadd %s428, %s440
          %s442 = smul.addr %s26, 128
          %s443 = scalar_lea.hbm %s3, %s442
          %s445 = sshll.u32 %s431, 4
          %s446 = int_to_ptr.vmem [resolvable:$true] %s445
          %448 = dma.vmem_to_hbm [thread:$0]  %s446, 128, %s443, %s428
        $region44: #{tpu_custom_call.1} parent=31 // pred_fallthru
          _
        // Predicated region
        $region45: #{tpu_custom_call.1} parent=31 // pred_check
          %p449 = pneg %p138
        $region46: #{tpu_custom_call.1} parent=31 // pred_check_branch
          %451 = sbr.rel (%p449) target = $region48
        $region47: #{tpu_custom_call.1} parent=31 // pred_region
          %s453 = ssub.s32 16, 16
          %454 = vsyncadd %s433, %s453
          %s455 = smul.addr %s26, 16
          %s456 = scalar_lea.hbm %s4, %s455
          %s458 = sshll.u32 %s435, 4
          %s459 = int_to_ptr.vmem [resolvable:$true] %s458
          %461 = dma.vmem_to_hbm [thread:$0]  %s459, 16, %s456, %s433
        $region48: #{tpu_custom_call.1} parent=31 // pred_fallthru
          _
      $region32: #{tpu_custom_call.1} parent=5 // pred_fallthru
        _
      %p462 = scmp.le.s32.totalorder 2, %s21
      // Predicated region
      $region49: #{tpu_custom_call.1} parent=5 // pred_check
        %p463 = pneg %p462
      $region50: #{tpu_custom_call.1} parent=5 // pred_check_branch
        %465 = sbr.rel (%p463) target = $region52
      $region51: #{tpu_custom_call.1} parent=5 // pred_region
        %s466 = ssub.s32 %s21, 2
        // Predicated region
        $region53: #{tpu_custom_call.1} parent=51 // pred_check
          %p467 = pneg %p118
        $region54: #{tpu_custom_call.1} parent=51 // pred_check_branch
          %469 = sbr.rel (%p467) target = $region56
        $region55: #{tpu_custom_call.1} parent=51 // pred_region
          %s470 = sand.u32 %s103, 1
          %s471 = scalar_lea.sflag [#allocation4], %s470
          %s472 = sand.u32 %s103, 1
          %s473 = smul.addr %s472, 8
          %s474 = scalar_lea.vmem [#allocation7], %s473
          %475 = dma.done %s471, 128
        $region56: #{tpu_custom_call.1} parent=51 // pred_fallthru
          _
        // Predicated region
        $region57: #{tpu_custom_call.1} parent=51 // pred_check
          %p476 = pneg %p144
        $region58: #{tpu_custom_call.1} parent=51 // pred_check_branch
          %478 = sbr.rel (%p476) target = $region60
        $region59: #{tpu_custom_call.1} parent=51 // pred_region
          %s479 = sand.u32 %s129, 1
          %s480 = scalar_lea.sflag [#allocation9], %s479
          %s481 = sand.u32 %s129, 1
          %s482 = scalar_lea.vmem [#allocation8], %s481
          %483 = dma.done %s480, 16
        $region60: #{tpu_custom_call.1} parent=51 // pred_fallthru
          _
      $region52: #{tpu_custom_call.1} parent=5 // pred_fallthru
        _
    $region6: #{tpu_custom_call.1} parent=1 // loop_footer
      %s25 = sadd.s32 1, %s21
    $region7: #{tpu_custom_call.1} parent=1 // loop_footer_branch
      %20 = sbr.rel target = $region3
    $region8: #{tpu_custom_call.1} parent=1 // loop_exit
      _
    %484 = vsyncpa [#allocation3], 1
    %s485 = scalar_lea.sflag [#allocation3], 1
    %486 = vsyncpa %s485, 1
    %487 = vsyncpa [#allocation6], 1
    %488 = vsyncpa [#allocation4], 1
    %s489 = scalar_lea.sflag [#allocation4], 1
    %490 = vsyncpa %s489, 1
    %491 = vsyncpa [#allocation9], 1
    %s492 = scalar_lea.sflag [#allocation9], 1
    %493 = vsyncpa %s492, 1

</llo_original>
